<compile_context>
chip_gen: v5e
topology: v5e:2x2
jax: 0.10.0
libtpu: 0.0.40
codegen_flags: <defaults>
</compile_context>

<pallas_src>
import functools

import numpy as np
import jax
import jax.numpy as jnp
from jax.experimental import pallas as pl
from jax.experimental.pallas import tpu as pltpu


# --------------------------- kernels ---------------------------

def _se_fused_kernel(x_ref, w1_ref, w2_ref, y_ref, *, inv_s):
    """Grid = (B,).  Whole SE block for one batch element, x resident in VMEM.

    x_ref: (C, S)   channels-first, spatial in lanes
    w1_ref: (H, C)  first Linear weight (bias-free)
    w2_ref: (C, H)  second Linear weight (bias-free)
    y_ref: (C, S)
    """
    x = x_ref[...]
    # global average pool: cross-lane sum (XLU), mean taken after the sum.
    pooled = jnp.sum(x.astype(jnp.float32), axis=1, keepdims=True) * inv_s  # (C, 1)
    h = jnp.maximum(
        jnp.dot(w1_ref[...], pooled, preferred_element_type=jnp.float32), 0.0)
    scale = jax.nn.sigmoid(
        jnp.dot(w2_ref[...], h, preferred_element_type=jnp.float32))        # (C, 1)
    y_ref[...] = x * scale.astype(x_ref.dtype)


def _se_pool_kernel(x_ref, sum_ref, *, s_total, ts):
    """Grid = (B, nS).  Fallback pass 1: per-channel sums over spatial tiles.

    x_ref:   (C, TS)  spatial tile (lane-dense)
    sum_ref: (C, 1)   f32 running sum (resident accumulator across the j axis)
    """
    j = pl.program_id(1)

    @pl.when(j == 0)
    def _():
        sum_ref[...] = jnp.zeros_like(sum_ref)

    x = x_ref[...].astype(jnp.float32)
    if s_total % ts != 0:
        # Last tile extends past S: padded lanes hold garbage -> mask them.
        lane = jax.lax.broadcasted_iota(jnp.int32, x.shape, dimension=1)
        valid = s_total - j * ts
        x = jnp.where(lane < valid, x, 0.0)

    sum_ref[...] += jnp.sum(x, axis=1, keepdims=True)


def _se_scale_kernel(x_ref, scale_ref, y_ref):
    """Grid = (B, nS).  Fallback pass 2: broadcast per-channel scale over the
    lane (spatial) axis and multiply.  Out-of-range lanes of the last partial
    output tile are discarded by Pallas, so no masking is needed."""
    y_ref[...] = x_ref[...] * scale_ref[...]            # (C, TS) * (C, 1)


# --------------------------- helpers ---------------------------

def _vmem_capacity_bytes():
    """Physical VMEM per TensorCore (v5e/v6e: 128 MiB, v7x: 64 MiB)."""
    try:
        return int(pltpu.get_tpu_info().vmem_capacity_bytes)
    except Exception:
        return 64 * 1024 * 1024      # conservative default (v7x)


def _pick_spatial_tile(S, C, itemsize, target_bytes):
    """Spatial tile (multiple of 128) so the (C, ts) block is ~target_bytes;
    full S if it already fits the budget (block == full dim is always legal)."""
    if C * S * itemsize <= target_bytes:
        return S
    ts = (target_bytes // (C * itemsize)) // 128 * 128
    return int(max(128, min(ts, S)))


def _vmem_limit(need_bytes, cap_bytes):
    return int(min(max(need_bytes + (4 << 20), 32 << 20), 0.9 * cap_bytes))


# --------------------------- wrapper ---------------------------

def se_block_pallas(x, w1, w2, *, force_two_pass=False, spatial_tile_bytes=2 << 20):
    """SEblock forward.

    x:  (B, C, X, Y, Z) float32/bfloat16 (PyTorch NCDHW)
    w1: (C // reduction, C)   nn.Linear weight (no bias)
    w2: (C, C // reduction)   nn.Linear weight (no bias)
    returns y with the same shape and dtype as x.
    """
    B, C, X, Y, Z = x.shape
    S = X * Y * Z
    Hc = w1.shape[0]
    itemsize = jnp.dtype(x.dtype).itemsize
    vmem_cap = _vmem_capacity_bytes()

    # channels-first, spatially flattened: pure reshape, no HBM transposes.
    x3 = x.reshape(B, C, S)
    w1f = w1.astype(jnp.float32)
    w2f = w2.astype(jnp.float32)

    # ---------- fused single-pass path (read x once, write y once) ----------
    # 2 in-buffers + 2 out-buffers of the full per-batch (C, S) block.
    fused_need = 4 * C * S * itemsize + 2 * (Hc * C) * 4
    if (not force_two_pass) and fused_need <= 0.7 * vmem_cap:
        y3 = pl.pallas_call(
            functools.partial(_se_fused_kernel, inv_s=1.0 / S),
            out_shape=jax.ShapeDtypeStruct((B, C, S), x.dtype),
            grid=(B,),
            in_specs=[
                pl.BlockSpec((None, C, S), lambda b: (b, 0, 0)),
                pl.BlockSpec((Hc, C), lambda b: (0, 0)),
                pl.BlockSpec((C, Hc), lambda b: (0, 0)),
            ],
            out_specs=pl.BlockSpec((None, C, S), lambda b: (b, 0, 0)),
            compiler_params=pltpu.CompilerParams(
                dimension_semantics=("parallel",),
                vmem_limit_bytes=_vmem_limit(fused_need, vmem_cap)),
        )(x3, w1f, w2f)
        return y3.reshape(B, C, X, Y, Z)

    # ---------- two-pass fallback (per-batch block too big for VMEM) ----------
    ts = _pick_spatial_tile(S, C, itemsize, spatial_tile_bytes)
    n_s = pl.cdiv(S, ts)

    x_spec = pl.BlockSpec((None, C, ts), lambda b, j: (b, 0, j))
    col_spec = pl.BlockSpec((None, C, 1), lambda b, j: (b, 0, 0))

    # pass 1: per-channel spatial sums (f32 accumulator resident across j).
    # NOTE: on v7x this pass only parallelizes over B across the two cores; a
    # partial-sum restructure could split the reduction too, left out for
    # robustness since the fused path covers all VMEM-fitting volumes.
    pass1_need = 2 * C * ts * itemsize + 2 * C * 4
    sums = pl.pallas_call(
        functools.partial(_se_pool_kernel, s_total=S, ts=ts),
        out_shape=jax.ShapeDtypeStruct((B, C, 1), jnp.float32),
        grid=(B, n_s),
        in_specs=[x_spec],
        out_specs=col_spec,
        compiler_params=pltpu.CompilerParams(
            dimension_semantics=("parallel", "arbitrary"),
            vmem_limit_bytes=_vmem_limit(pass1_need, vmem_cap)),
    )(x3)

    # tiny FC epilogue batched in plain JAX (properly shaped matmuls).
    pooled = sums[:, :, 0] * (1.0 / S)                       # (B, C)
    h = jnp.maximum(pooled @ w1f.T, 0.0)                     # (B, H)
    scale = jax.nn.sigmoid(h @ w2f.T).astype(x.dtype)        # (B, C)
    scale3 = scale[:, :, None]                               # (B, C, 1)

    # pass 2: broadcast-scale every spatial tile (fully parallel).
    pass2_need = 4 * C * ts * itemsize + 2 * C * itemsize
    y3 = pl.pallas_call(
        _se_scale_kernel,
        out_shape=jax.ShapeDtypeStruct((B, C, S), x.dtype),
        grid=(B, n_s),
        in_specs=[x_spec, col_spec],
        out_specs=x_spec,
        compiler_params=pltpu.CompilerParams(
            dimension_semantics=("parallel", "parallel"),
            vmem_limit_bytes=_vmem_limit(pass2_need, vmem_cap)),
    )(x3, scale3)

    return y3.reshape(B, C, X, Y, Z)


# --------------------- pure-JAX reference (mirrors PyTorch) ---------------------

def se_block_ref(x, w1, w2):
    pooled = jnp.mean(x.astype(jnp.float32), axis=(2, 3, 4))     # (B, C)
    h = jnp.maximum(pooled @ w1.T.astype(jnp.float32), 0.0)
    s = jax.nn.sigmoid(h @ w2.T.astype(jnp.float32))             # (B, C)
    return x * s[:, :, None, None, None].astype(x.dtype)


if __name__ == "__main__":
    key = jax.random.PRNGKey(0)
    k = jax.random.split(key, 6)

    # ---- case 1: fused single-pass path (per-batch (C, S) block fits VMEM) ----
    B, C, X, Y, Z = 2, 64, 8, 8, 8
    H = C // 16
    x = jax.random.normal(k[0], (B, C, X, Y, Z), jnp.float32)
    w1 = jax.random.normal(k[1], (H, C), jnp.float32) * 0.3
    w2 = jax.random.normal(k[2], (C, H), jnp.float32) * 0.3

    y = jax.block_until_ready(se_block_pallas(x, w1, w2))
    np.testing.assert_allclose(np.asarray(y), np.asarray(se_block_ref(x, w1, w2)),
                               rtol=1e-2, atol=1e-2)

    # ---- case 2: two-pass fallback, byte-budget tiles + masked partial tile ----
    B2, C2, X2, Y2, Z2 = 2, 32, 5, 7, 9        # S = 315 (not a multiple of 128)
    H2 = C2 // 16
    x2 = jax.random.normal(k[3], (B2, C2, X2, Y2, Z2), jnp.float32)
    w1b = jax.random.normal(k[4], (H2, C2), jnp.float32) * 0.3
    w2b = jax.random.normal(k[5], (C2, H2), jnp.float32) * 0.3

    y2 = jax.block_until_ready(
        se_block_pallas(x2, w1b, w2b, force_two_pass=True,
                        spatial_tile_bytes=128 * C2 * 4))   # ts=128 -> 3 tiles, last masked
    np.testing.assert_allclose(np.asarray(y2), np.asarray(se_block_ref(x2, w1b, w2b)),
                               rtol=1e-2, atol=1e-2)

    print("KERNEL_OK")
</pallas_src>

<mosaic_0001>
module attributes {stable_mosaic.version = 11 : i64} {
  func.func @_se_fused_kernel(%arg0: i32, %arg1: memref<1x64x512xf32, #tpu.memory_space<vmem>>, %arg2: memref<4x64xf32, #tpu.memory_space<vmem>>, %arg3: memref<64x4xf32, #tpu.memory_space<vmem>>, %arg4: memref<1x64x512xf32, #tpu.memory_space<vmem>>) attributes {dimension_semantics = [#tpu.dimension_semantics<parallel>], iteration_bounds = array<i64: 2>, scalar_prefetch = 0 : i64, scratch_operands = 0 : i64, tpu.core_type = #tpu.core_type<tc>, window_params = [{transform_indices = @transform_0, window_bounds = array<i64: 1, 64, 512>}, {pipeline_mode = #tpu.pipeline_mode<synchronous>, transform_indices = @transform_1, window_bounds = array<i64: 4, 64>}, {pipeline_mode = #tpu.pipeline_mode<synchronous>, transform_indices = @transform_2, window_bounds = array<i64: 64, 4>}, {transform_indices = @transform_3, window_bounds = array<i64: 1, 64, 512>}]} {
    %c0 = arith.constant 0 : index
    %c0_0 = arith.constant 0 : index
    %c0_1 = arith.constant 0 : index
    %0 = vector.load %arg1[%c0, %c0_0, %c0_1] : memref<1x64x512xf32, #tpu.memory_space<vmem>>, vector<1x64x512xf32>
    %1 = vector.shape_cast %0 : vector<1x64x512xf32> to vector<64x512xf32>
    %cst = arith.constant dense<0.000000e+00> : vector<64xf32>
    %2 = vector.multi_reduction <add>, %1, %cst [1] : vector<64x512xf32> to vector<64xf32>
    %3 = vector.shape_cast %2 : vector<64xf32> to vector<64x1xf32>
    %cst_2 = arith.constant 0.001953125 : f32
    %4 = vector.broadcast %cst_2 : f32 to vector<64x1xf32>
    %5 = arith.mulf %3, %4 : vector<64x1xf32>
    %c0_3 = arith.constant 0 : index
    %c0_4 = arith.constant 0 : index
    %6 = vector.load %arg2[%c0_3, %c0_4] : memref<4x64xf32, #tpu.memory_space<vmem>>, vector<4x64xf32>
    %cst_5 = arith.constant dense<0.000000e+00> : vector<4x1xf32>
    %7 = tpu.matmul %6, %5, %cst_5 {dimension_numbers = #tpu.dot_dimension_numbers<[1], [0], [0], [1], [0, 0, 1, 1], [], []>} : vector<4x64xf32>, vector<64x1xf32>, vector<4x1xf32> -> vector<4x1xf32>
    %cst_6 = arith.constant 0.000000e+00 : f32
    %8 = vector.broadcast %cst_6 : f32 to vector<4x1xf32>
    %9 = arith.maximumf %7, %8 : vector<4x1xf32>
    %c0_7 = arith.constant 0 : index
    %c0_8 = arith.constant 0 : index
    %10 = vector.load %arg3[%c0_7, %c0_8] : memref<64x4xf32, #tpu.memory_space<vmem>>, vector<64x4xf32>
    %cst_9 = arith.constant dense<0.000000e+00> : vector<64x1xf32>
    %11 = tpu.matmul %10, %9, %cst_9 {dimension_numbers = #tpu.dot_dimension_numbers<[1], [0], [0], [1], [0, 0, 1, 1], [], []>} : vector<64x4xf32>, vector<4x1xf32>, vector<64x1xf32> -> vector<64x1xf32>
    %12 = arith.negf %11 : vector<64x1xf32>
    %13 = math.exp %12 : vector<64x1xf32>
    %cst_10 = arith.constant 1.000000e+00 : f32
    %14 = vector.broadcast %cst_10 : f32 to vector<64x1xf32>
    %15 = arith.addf %14, %13 : vector<64x1xf32>
    %16 = arith.divf %14, %15 : vector<64x1xf32>
    %17 = vector.broadcast %16 : vector<64x1xf32> to vector<64x512xf32>
    %18 = arith.mulf %1, %17 : vector<64x512xf32>
    %c0_11 = arith.constant 0 : index
    %c0_12 = arith.constant 0 : index
    %c0_13 = arith.constant 0 : index
    %19 = vector.load %arg4[%c0_11, %c0_12, %c0_13] : memref<1x64x512xf32, #tpu.memory_space<vmem>>, vector<1x64x512xf32>
    %20 = vector.shape_cast %19 : vector<1x64x512xf32> to vector<64x512xf32>
    %21 = vector.shape_cast %18 : vector<64x512xf32> to vector<1x64x512xf32>
    tpu.vector_store %arg4[%c0_11, %c0_12, %c0_13], %21 {strides = array<i32>} : memref<1x64x512xf32, #tpu.memory_space<vmem>>, vector<1x64x512xf32>,
    return
  }
  func.func @transform_0(%arg0: i32) -> (i32, i32, i32) {
    %c0_i32 = arith.constant 0 : i32
    %c0_i32_0 = arith.constant 0 : i32
    %c0_i32_1 = arith.constant 0 : i32
    return %arg0, %c0_i32, %c0_i32_0 : i32, i32, i32
  }
  func.func @transform_1(%arg0: i32) -> (i32, i32) {
    %c0_i32 = arith.constant 0 : i32
    %c0_i32_0 = arith.constant 0 : i32
    %c0_i32_1 = arith.constant 0 : i32
    return %c0_i32, %c0_i32_0 : i32, i32
  }
  func.func @transform_2(%arg0: i32) -> (i32, i32) {
    %c0_i32 = arith.constant 0 : i32
    %c0_i32_0 = arith.constant 0 : i32
    %c0_i32_1 = arith.constant 0 : i32
    return %c0_i32, %c0_i32_0 : i32, i32
  }
  func.func @transform_3(%arg0: i32) -> (i32, i32, i32) {
    %c0_i32 = arith.constant 0 : i32
    %c0_i32_0 = arith.constant 0 : i32
    %c0_i32_1 = arith.constant 0 : i32
    return %arg0, %c0_i32, %c0_i32_0 : i32, i32, i32
  }
}

</mosaic_0001>

<llo_original>
// kernel: tpu_custom_call.1
$region0: #{tpu_custom_call.1}
  #allocation0 [shape = 'u32[]', space=smem, size = 0x4, offset = 0x4, fixed_abs, tag = 'smem constant byte address 0x4 - core index']
  #allocation1 [shape = 'u32[72,128]{1,0:T(1,128)}', space=vmem, size = 0x9000, scoped, tag = 'internal scratch']
  %s0 = inlined_call_operand.hbm [shape: f32[2,64,512], index: 0, kind: input, shape index: {}]
  %s1 = inlined_call_operand.vmem [shape: f32[4,64], index: 1, kind: input, shape index: {}]
  %s2 = inlined_call_operand.vmem [shape: f32[64,4], index: 2, kind: input, shape index: {}]
  %s3 = inlined_call_operand.hbm [shape: f32[2,64,512], index: 3, kind: output, shape index: {}]
  %s4 = sld [smem:[#allocation0]]
  $region49: #{tpu_custom_call.1} parent=0
    _
  %s6 = ssub.s32 1, %s4
  %s7 = scalar_select 0, %s6, %s4
  $region1: #{tpu_custom_call.1} parent=0
    #allocation2 [shape = 'u8[262144]{0}', space=vmem, size = 0x40000, scoped, tag = 'input window, operand 0']
    #allocation3 [shape = 's32[2]{0}', space=sflag, size = 0x8, scoped, tag = 'scoped memory for tpu_custom_call.1']
    #allocation4 [shape = 's32[2]{0}', space=sflag, size = 0x8, scoped, tag = 'scoped memory for tpu_custom_call.1']
    #allocation5 [shape = 'u8[262144]{0}', space=vmem, size = 0x40000, scoped, tag = 'output window, operand 0']
    %8 = vsyncpa [#allocation3], 0
    %s9 = scalar_lea.sflag [#allocation3], 1
    %10 = vsyncpa %s9, 0
    %11 = vsyncpa [#allocation4], 0
    %s12 = scalar_lea.sflag [#allocation4], 1
    %13 = vsyncpa %s12, 0
    loop: start=0, step=1, limit=4
    $region2: #{tpu_custom_call.1} parent=1 // loop_pre_header
      _
    $region3: #{tpu_custom_call.1} parent=1 // loop_header
      %s15 = sphi 0, %s19
      %p16 = scmp.ge.s32.totalorder %s15, 4
      %s25 = sphi 0, %s27
      %s28 = sphi 0, %s25
      %s29 = sphi 0, %s28
      %s45 = sphi 0, %s29
      %s49 = sphi 0, %s49
      %s51 = sphi 0, %s49
      %s52 = sphi 0, %s51
      %s66 = sphi 0, %s52
      %s70 = sphi 0, %s70
      %s72 = sphi 0, %s70
      %s73 = sphi 0, %s72
      %s87 = sphi 0, %s73
      %s93 = sphi 0, %s95
      %s96 = sphi 0, %s93
      %s97 = sphi 0, %s96
      %s113 = sphi 0, %s97
    $region4: #{tpu_custom_call.1} parent=1 // loop_header_branch
      %18 = sbr.rel (%p16) target = $region8
    $region5: #{tpu_custom_call.1} parent=1 // loop_body
      %s20 = ssub.s32 %s15, 1
      %s21 = ssub.s32 %s15, 2
      %s22 = sadd.s32 %s15, 1
      %s23 = ssub.s32 %s15, %s22
      %p24 = scmp.eq.s32.totalorder %s23, 0
      %s26 = sadd.s32 %s25, 1
      %s27 = scalar_select %p24, %s25, %s26
      %p30 = pneg %p24
      %p31 = scmp.eq.s32.totalorder %s15, 1
      %p32 = por %p30, %p31
      %p33 = scmp.ne.s32.totalorder %s25, %s28
      %p34 = scmp.eq.s32.totalorder %s15, 0
      %p35 = por %p33, %p34
      %p36 = scmp.ne.s32.totalorder %s25, %s28
      %p37 = scmp.eq.s32.totalorder %s20, 1
      %p38 = por %p36, %p37
      %p39 = scmp.ne.s32.totalorder %s28, %s29
      %p40 = scmp.eq.s32.totalorder %s20, 0
      %p41 = por %p39, %p40
      %p42 = scmp.ne.s32.totalorder %s28, %s29
      %p43 = scmp.eq.s32.totalorder %s21, 1
      %p44 = por %p42, %p43
      %p46 = scmp.ne.s32.totalorder %s29, %s45
      %p47 = scmp.eq.s32.totalorder %s21, 0
      %p48 = por %p46, %p47
      %s50 = sadd.s32 %s49, 1
      %p53 = scmp.eq.s32.totalorder %s15, 1
      %p54 = scmp.ne.s32.totalorder %s49, %s51
      %p55 = scmp.eq.s32.totalorder %s15, 0
      %p56 = por %p54, %p55
      %p57 = scmp.ne.s32.totalorder %s49, %s51
      %p58 = scmp.eq.s32.totalorder %s20, 1
      %p59 = por %p57, %p58
      %p60 = scmp.ne.s32.totalorder %s51, %s52
      %p61 = scmp.eq.s32.totalorder %s20, 0
      %p62 = por %p60, %p61
      %p63 = scmp.ne.s32.totalorder %s51, %s52
      %p64 = scmp.eq.s32.totalorder %s21, 1
      %p65 = por %p63, %p64
      %p67 = scmp.ne.s32.totalorder %s52, %s66
      %p68 = scmp.eq.s32.totalorder %s21, 0
      %p69 = por %p67, %p68
      %s71 = sadd.s32 %s70, 1
      %p74 = scmp.eq.s32.totalorder %s15, 1
      %p75 = scmp.ne.s32.totalorder %s70, %s72
      %p76 = scmp.eq.s32.totalorder %s15, 0
      %p77 = por %p75, %p76
      %p78 = scmp.ne.s32.totalorder %s70, %s72
      %p79 = scmp.eq.s32.totalorder %s20, 1
      %p80 = por %p78, %p79
      %p81 = scmp.ne.s32.totalorder %s72, %s73
      %p82 = scmp.eq.s32.totalorder %s20, 0
      %p83 = por %p81, %p82
      %p84 = scmp.ne.s32.totalorder %s72, %s73
      %p85 = scmp.eq.s32.totalorder %s21, 1
      %p86 = por %p84, %p85
      %p88 = scmp.ne.s32.totalorder %s73, %s87
      %p89 = scmp.eq.s32.totalorder %s21, 0
      %p90 = por %p88, %p89
      %s91 = ssub.s32 %s15, %s22
      %p92 = scmp.eq.s32.totalorder %s91, 0
      %s94 = sadd.s32 %s93, 1
      %s95 = scalar_select %p92, %s93, %s94
      %p98 = pneg %p92
      %p99 = scmp.eq.s32.totalorder %s15, 1
      %p100 = por %p98, %p99
      %p101 = scmp.ne.s32.totalorder %s93, %s96
      %p102 = scmp.eq.s32.totalorder %s15, 0
      %p103 = por %p101, %p102
      %p104 = scmp.ne.s32.totalorder %s93, %s96
      %p105 = scmp.eq.s32.totalorder %s20, 1
      %p106 = por %p104, %p105
      %p107 = scmp.ne.s32.totalorder %s96, %s97
      %p108 = scmp.eq.s32.totalorder %s20, 0
      %p109 = por %p107, %p108
      %p110 = scmp.ne.s32.totalorder %s96, %s97
      %p111 = scmp.eq.s32.totalorder %s21, 1
      %p112 = por %p110, %p111
      %p114 = scmp.ne.s32.totalorder %s97, %s113
      %p115 = scmp.eq.s32.totalorder %s21, 0
      %p116 = por %p114, %p115
      %p117 = scmp.le.s32.totalorder 1, %s15
      %p118 = scmp.lt.s32.totalorder %s15, 3
      %p119 = pnand %p117, %p118
      %p120 = pneg %p119
      // Predicated region
      $region9: #{tpu_custom_call.1} parent=5 // pred_check
        _
      $region10: #{tpu_custom_call.1} parent=5 // pred_check_branch
        %122 = sbr.rel (%p119) target = $region12
      $region11: #{tpu_custom_call.1} parent=5 // pred_region
        %s123 = ssub.s32 %s15, 1
        // Predicated region
        $region13: #{tpu_custom_call.1} parent=11 // pred_check
          %p124 = pneg %p62
        $region14: #{tpu_custom_call.1} parent=11 // pred_check_branch
          %126 = sbr.rel (%p124) target = $region16
        $region15: #{tpu_custom_call.1} parent=11 // pred_region
          _
        $region16: #{tpu_custom_call.1} parent=11 // pred_fallthru
          _
        // Predicated region
        $region17: #{tpu_custom_call.1} parent=11 // pred_check
          %p127 = pneg %p83
        $region18: #{tpu_custom_call.1} parent=11 // pred_check_branch
          %129 = sbr.rel (%p127) target = $region20
        $region19: #{tpu_custom_call.1} parent=11 // pred_region
          _
        $region20: #{tpu_custom_call.1} parent=11 // pred_fallthru
          _
      $region12: #{tpu_custom_call.1} parent=5 // pred_fallthru
        _
      %p130 = scmp.lt.s32.totalorder %s15, 2
      // Predicated region
      $region21: #{tpu_custom_call.1} parent=5 // pred_check
        %p131 = pneg %p130
      $region22: #{tpu_custom_call.1} parent=5 // pred_check_branch
        %133 = sbr.rel (%p131) target = $region24
      $region23: #{tpu_custom_call.1} parent=5 // pred_region
        // Predicated region
        $region25: #{tpu_custom_call.1} parent=23 // pred_check
          %p134 = pneg %p35
        $region26: #{tpu_custom_call.1} parent=23 // pred_check_branch
          %136 = sbr.rel (%p134) target = $region28
        $region27: #{tpu_custom_call.1} parent=23 // pred_region
          %s137 = sand.u32 %s25, 1
          %s138 = scalar_lea.sflag [#allocation3], %s137
          %s139 = sand.u32 %s25, 1
          %s140 = smul.addr %s139, 256
          %s141 = scalar_lea.vmem [#allocation2], %s140
          %143 = vsyncadd %s138, 0
          %s144 = smul.addr %s15, 32
          %s145 = smul.addr %s144, 8
          %s146 = scalar_lea.hbm %s0, %s145
          %s147 = sshll.u32 %s146, 4
          %s148 = int_to_ptr.hbm [resolvable:$true] %s147
          %s149 = sshll.u32 %s141, 4
          %s150 = int_to_ptr.vmem [resolvable:$true] %s149
          %155 = dma.hbm_to_vmem [thread:$0]  %s148, 4096, %s150, %s138, 512, 512, 32
        $region28: #{tpu_custom_call.1} parent=23 // pred_fallthru
          _
      $region24: #{tpu_custom_call.1} parent=5 // pred_fallthru
        _
      %p156 = scmp.le.s32.totalorder 1, %s15
      %p157 = scmp.lt.s32.totalorder %s15, 3
      %p158 = pnand %p156, %p157
      %p159 = pneg %p158
      // Predicated region
      $region29: #{tpu_custom_call.1} parent=5 // pred_check
        _
      $region30: #{tpu_custom_call.1} parent=5 // pred_check_branch
        %161 = sbr.rel (%p158) target = $region32
      $region31: #{tpu_custom_call.1} parent=5 // pred_region
        %s162 = ssub.s32 %s15, 1
        %s163 = sand.u32 %s28, 1
        %s164 = scalar_lea.sflag [#allocation3], %s163
        %s165 = sand.u32 %s28, 1
        %s166 = smul.addr %s165, 256
        %s167 = scalar_lea.vmem [#allocation2], %s166
        // Predicated region
        $region33: #{tpu_custom_call.1} parent=31 // pred_check
          %p168 = pneg %p41
        $region34: #{tpu_custom_call.1} parent=31 // pred_check_branch
          %170 = sbr.rel (%p168) target = $region36
        $region35: #{tpu_custom_call.1} parent=31 // pred_region
          %172 = dma.done %s164, 4096
        $region36: #{tpu_custom_call.1} parent=31 // pred_fallthru
          _
        %s173 = sand.u32 %s28, 1
        %s174 = scalar_lea.sflag [#allocation3], %s173
        %s175 = sand.u32 %s28, 1
        %s176 = smul.addr %s175, 256
        %s177 = scalar_lea.vmem [#allocation2], %s176
        %p178 = pneg %p41
        %p179 = pneg %p38
        %p180 = pneg %p62
        %p181 = pneg %p59
        %p182 = pneg %p83
        %p183 = pneg %p80
        %p184 = pneg %p109
        %p185 = pneg %p106
        %s186 = sand.u32 %s96, 1
        %s187 = scalar_lea.sflag [#allocation4], %s186
        %s188 = sand.u32 %s96, 1
        %s189 = smul.addr %s188, 256
        %s190 = scalar_lea.vmem [#allocation5], %s189
        %v191 = vld [vmem:[%s167] sm:$0xff]
        %v192 = vld [vmem:[%s167 + $0x8] sm:$0xff]
        %v193 = vld [vmem:[%s167 + $0x10] sm:$0xff]
        %v194 = vld [vmem:[%s167 + $0x18] sm:$0xff]
        %v195 = vld [vmem:[%s167 + $0x20] sm:$0xff]
        %v196 = vld [vmem:[%s167 + $0x28] sm:$0xff]
        %v197 = vld [vmem:[%s167 + $0x30] sm:$0xff]
        %v198 = vld [vmem:[%s167 + $0x38] sm:$0xff]
        %v199 = vld [vmem:[%s167 + $0x40] sm:$0xff]
        %v200 = vld [vmem:[%s167 + $0x48] sm:$0xff]
        %v201 = vld [vmem:[%s167 + $0x50] sm:$0xff]
        %v202 = vld [vmem:[%s167 + $0x58] sm:$0xff]
        %v203 = vld [vmem:[%s167 + $0x60] sm:$0xff]
        %v204 = vld [vmem:[%s167 + $0x68] sm:$0xff]
        %v205 = vld [vmem:[%s167 + $0x70] sm:$0xff]
        %v206 = vld [vmem:[%s167 + $0x78] sm:$0xff]
        %v207 = vld [vmem:[%s167 + $0x80] sm:$0xff]
        %v208 = vld [vmem:[%s167 + $0x88] sm:$0xff]
        %v209 = vld [vmem:[%s167 + $0x90] sm:$0xff]
        %v210 = vld [vmem:[%s167 + $0x98] sm:$0xff]
        %v211 = vld [vmem:[%s167 + $0xa0] sm:$0xff]
        %v212 = vld [vmem:[%s167 + $0xa8] sm:$0xff]
        %v213 = vld [vmem:[%s167 + $0xb0] sm:$0xff]
        %v214 = vld [vmem:[%s167 + $0xb8] sm:$0xff]
        %v215 = vld [vmem:[%s167 + $0xc0] sm:$0xff]
        %v216 = vld [vmem:[%s167 + $0xc8] sm:$0xff]
        %v217 = vld [vmem:[%s167 + $0xd0] sm:$0xff]
        %v218 = vld [vmem:[%s167 + $0xd8] sm:$0xff]
        %v219 = vld [vmem:[%s167 + $0xe0] sm:$0xff]
        %v220 = vld [vmem:[%s167 + $0xe8] sm:$0xff]
        %v221 = vld [vmem:[%s167 + $0xf0] sm:$0xff]
        %v222 = vld [vmem:[%s167 + $0xf8] sm:$0xff]
        %v223 = vadd.f32 %v191, %v192
        %v224 = vadd.f32 %v223, %v193
        %v225 = vadd.f32 %v224, %v194
        %226 = vadd.xlane.f32.xlu0 %v225
        %v227 = vpop.xlane.xlu0 %226
        %v228 = vadd.f32 %v195, %v196
        %v229 = vadd.f32 %v228, %v197
        %v230 = vadd.f32 %v229, %v198
        %231 = vadd.xlane.f32.xlu0 %v230
        %v232 = vpop.xlane.xlu0 %231
        %v233 = vadd.f32 %v199, %v200
        %v234 = vadd.f32 %v233, %v201
        %v235 = vadd.f32 %v234, %v202
        %236 = vadd.xlane.f32.xlu0 %v235
        %v237 = vpop.xlane.xlu0 %236
        %v238 = vadd.f32 %v203, %v204
        %v239 = vadd.f32 %v238, %v205
        %v240 = vadd.f32 %v239, %v206
        %241 = vadd.xlane.f32.xlu0 %v240
        %v242 = vpop.xlane.xlu0 %241
        %v243 = vadd.f32 %v207, %v208
        %v244 = vadd.f32 %v243, %v209
        %v245 = vadd.f32 %v244, %v210
        %246 = vadd.xlane.f32.xlu0 %v245
        %v247 = vpop.xlane.xlu0 %246
        %v248 = vadd.f32 %v211, %v212
        %v249 = vadd.f32 %v248, %v213
        %v250 = vadd.f32 %v249, %v214
        %251 = vadd.xlane.f32.xlu0 %v250
        %v252 = vpop.xlane.xlu0 %251
        %v253 = vadd.f32 %v215, %v216
        %v254 = vadd.f32 %v253, %v217
        %v255 = vadd.f32 %v254, %v218
        %256 = vadd.xlane.f32.xlu0 %v255
        %v257 = vpop.xlane.xlu0 %256
        %v258 = vadd.f32 %v219, %v220
        %v259 = vadd.f32 %v258, %v221
        %v260 = vadd.f32 %v259, %v222
        %261 = vadd.xlane.f32.xlu0 %v260
        %v262 = vpop.xlane.xlu0 %261
        %v263 = vmul.f32 %v227, 0.001953125
        %v264 = vmul.f32 %v232, 0.001953125
        %v265 = vmul.f32 %v237, 0.001953125
        %v266 = vmul.f32 %v242, 0.001953125
        %v267 = vmul.f32 %v247, 0.001953125
        %v268 = vmul.f32 %v252, 0.001953125
        %v269 = vmul.f32 %v257, 0.001953125
        %v270 = vmul.f32 %v262, 0.001953125
        %v271 = vld [vmem:[%s1] sm:$0xf]
        %vm272 = vcmask 523264
        %v274 = vsel %vm272, %v271, 0
        %276 = vmatpush.msra.mxu0 0.0
        %277 = vmatpush.msra.mxu0 0.0
        %278 = vmatpush.msra.mxu0 0.0
        %279 = vmatpush.msra.mxu0 0.0
        %280 = vmatpush.msra.mxu0 0.0
        %281 = vmatpush.msra.mxu0 0.0
        %282 = vmatpush.msra.mxu0 0.0
        %283 = vmatpush.msra.mxu0 0.0
        %284 = vmatpush.msra.mxu0 %v270
        %285 = vmatpush.msra.mxu0 %v269
        %286 = vmatpush.msra.mxu0 %v268
        %287 = vmatpush.msra.mxu0 %v267
        %288 = vmatpush.msra.mxu0 %v266
        %289 = vmatpush.msra.mxu0 %v265
        %290 = vmatpush.msra.mxu0 %v264
        %291 = vmatpush.msra.mxu0 %v263
        %292 = vmatmul.f32.gmra.mxu0 %v274
        %v293 = vpop.f32.mrf.mxu0
        %v294 = vadd.f32 0.0, %v293
        %295 = vdwg.mxu0
        %v296 = vmax.f32 %v294, 0.0
        %v297 = vld [vmem:[%s2] sm:$0xff]
        %v298 = vld [vmem:[%s2 + $0x8] sm:$0xff]
        %v299 = vld [vmem:[%s2 + $0x10] sm:$0xff]
        %v300 = vld [vmem:[%s2 + $0x18] sm:$0xff]
        %v301 = vld [vmem:[%s2 + $0x20] sm:$0xff]
        %v302 = vld [vmem:[%s2 + $0x28] sm:$0xff]
        %v303 = vld [vmem:[%s2 + $0x30] sm:$0xff]
        %v304 = vld [vmem:[%s2 + $0x38] sm:$0xff]
        %vm305 = vcmask 31744
        %v307 = vsel %vm305, %v297, 0
        %v310 = vsel %vm305, %v298, 0
        %v313 = vsel %vm305, %v299, 0
        %v316 = vsel %vm305, %v300, 0
        %v319 = vsel %vm305, %v301, 0
        %v322 = vsel %vm305, %v302, 0
        %v325 = vsel %vm305, %v303, 0
        %v328 = vsel %vm305, %v304, 0
        %vm330 = vcmask 1043456
        %v332 = vsel %vm330, %v296, 0
        %334 = vmatpush.msra.mxu0 0.0
        %335 = vmatpush.msra.mxu0 0.0
        %336 = vmatpush.msra.mxu0 0.0
        %337 = vmatpush.msra.mxu0 0.0
        %338 = vmatpush.msra.mxu0 0.0
        %339 = vmatpush.msra.mxu0 0.0
        %340 = vmatpush.msra.mxu0 0.0
        %341 = vmatpush.msra.mxu0 0.0
        %342 = vmatpush.msra.mxu0 0.0
        %343 = vmatpush.msra.mxu0 0.0
        %344 = vmatpush.msra.mxu0 0.0
        %345 = vmatpush.msra.mxu0 0.0
        %346 = vmatpush.msra.mxu0 0.0
        %347 = vmatpush.msra.mxu0 0.0
        %348 = vmatpush.msra.mxu0 0.0
        %349 = vmatpush.msra.mxu0 %v332
        %350 = vmatmul.f32.gmra.mxu0 %v307
        %v351 = vpop.f32.mrf.mxu0
        %v352 = vadd.f32 0.0, %v351
        %353 = vmatmul.f32.gmra.mxu0 %v310
        %v354 = vpop.f32.mrf.mxu0
        %v355 = vadd.f32 0.0, %v354
        %356 = vmatmul.f32.gmra.mxu0 %v313
        %v357 = vpop.f32.mrf.mxu0
        %v358 = vadd.f32 0.0, %v357
        %359 = vmatmul.f32.gmra.mxu0 %v316
        %v360 = vpop.f32.mrf.mxu0
        %v361 = vadd.f32 0.0, %v360
        %362 = vmatmul.f32.gmra.mxu0 %v319
        %v363 = vpop.f32.mrf.mxu0
        %v364 = vadd.f32 0.0, %v363
        %365 = vmatmul.f32.gmra.mxu0 %v322
        %v366 = vpop.f32.mrf.mxu0
        %v367 = vadd.f32 0.0, %v366
        %368 = vmatmul.f32.gmra.mxu0 %v325
        %v369 = vpop.f32.mrf.mxu0
        %v370 = vadd.f32 0.0, %v369
        %371 = vmatmul.f32.gmra.mxu0 %v328
        %v372 = vpop.f32.mrf.mxu0
        %v373 = vadd.f32 0.0, %v372
        %374 = vdwg.mxu0
        %v375 = vxor.u32 %v352, 2147483648
        %v376 = vxor.u32 %v355, 2147483648
        %v377 = vxor.u32 %v358, 2147483648
        %v378 = vxor.u32 %v361, 2147483648
        %v379 = vxor.u32 %v364, 2147483648
        %v380 = vxor.u32 %v367, 2147483648
        %v381 = vxor.u32 %v370, 2147483648
        %v382 = vxor.u32 %v373, 2147483648
        %v383 = vmul.f32 %v375, 1.442695
        %v384 = vpow.pop %v383
        %v385 = vmul.f32 %v376, 1.442695
        %v386 = vpow.pop %v385
        %v387 = vmul.f32 %v377, 1.442695
        %v388 = vpow.pop %v387
        %v389 = vmul.f32 %v378, 1.442695
        %v390 = vpow.pop %v389
        %v391 = vmul.f32 %v379, 1.442695
        %v392 = vpow.pop %v391
        %v393 = vmul.f32 %v380, 1.442695
        %v394 = vpow.pop %v393
        %v395 = vmul.f32 %v381, 1.442695
        %v396 = vpow.pop %v395
        %v397 = vmul.f32 %v382, 1.442695
        %v398 = vpow.pop %v397
        %v399 = vadd.f32 %v384, 1.0
        %v400 = vadd.f32 %v386, 1.0
        %v401 = vadd.f32 %v388, 1.0
        %v402 = vadd.f32 %v390, 1.0
        %v403 = vadd.f32 %v392, 1.0
        %v404 = vadd.f32 %v394, 1.0
        %v405 = vadd.f32 %v396, 1.0
        %v406 = vadd.f32 %v398, 1.0
        %v407 = vrcp.pop %v399
        %v408 = vmul.f32 %v399, %v407
        %v409 = vsub.f32 1.0, %v408
        %v410 = vmul.f32 %v407, %v409
        %v411 = vadd.f32 %v407, %v410
        %vm412 = vweird.f32 %v399
        %vm413 = vweird.f32 %v407
        %vm414 = vmor %vm412, %vm413
        %v415 = vsel %vm414, %v407, %v411
        %v416 = vand.u32 2147483647, %v399
        %vm417 = vcmp.eq.f32.partialorder %v416, 8.507059e+37
        %v418 = vand.u32 %v399, 2147483648
        %v419 = vor.u32 1.1754944e-38, %v418
        %v420 = vsel %vm417, %v419, %v415
        %v421 = vmul.f32 1.0, %v420
        %v422 = vrcp.pop %v400
        %v423 = vmul.f32 %v400, %v422
        %v424 = vsub.f32 1.0, %v423
        %v425 = vmul.f32 %v422, %v424
        %v426 = vadd.f32 %v422, %v425
        %vm427 = vweird.f32 %v400
        %vm428 = vweird.f32 %v422
        %vm429 = vmor %vm427, %vm428
        %v430 = vsel %vm429, %v422, %v426
        %v431 = vand.u32 2147483647, %v400
        %vm432 = vcmp.eq.f32.partialorder %v431, 8.507059e+37
        %v433 = vand.u32 %v400, 2147483648
        %v434 = vor.u32 1.1754944e-38, %v433
        %v435 = vsel %vm432, %v434, %v430
        %v436 = vmul.f32 1.0, %v435
        %v437 = vrcp.pop %v401
        %v438 = vmul.f32 %v401, %v437
        %v439 = vsub.f32 1.0, %v438
        %v440 = vmul.f32 %v437, %v439
        %v441 = vadd.f32 %v437, %v440
        %vm442 = vweird.f32 %v401
        %vm443 = vweird.f32 %v437
        %vm444 = vmor %vm442, %vm443
        %v445 = vsel %vm444, %v437, %v441
        %v446 = vand.u32 2147483647, %v401
        %vm447 = vcmp.eq.f32.partialorder %v446, 8.507059e+37
        %v448 = vand.u32 %v401, 2147483648
        %v449 = vor.u32 1.1754944e-38, %v448
        %v450 = vsel %vm447, %v449, %v445
        %v451 = vmul.f32 1.0, %v450
        %v452 = vrcp.pop %v402
        %v453 = vmul.f32 %v402, %v452
        %v454 = vsub.f32 1.0, %v453
        %v455 = vmul.f32 %v452, %v454
        %v456 = vadd.f32 %v452, %v455
        %vm457 = vweird.f32 %v402
        %vm458 = vweird.f32 %v452
        %vm459 = vmor %vm457, %vm458
        %v460 = vsel %vm459, %v452, %v456
        %v461 = vand.u32 2147483647, %v402
        %vm462 = vcmp.eq.f32.partialorder %v461, 8.507059e+37
        %v463 = vand.u32 %v402, 2147483648
        %v464 = vor.u32 1.1754944e-38, %v463
        %v465 = vsel %vm462, %v464, %v460
        %v466 = vmul.f32 1.0, %v465
        %v467 = vrcp.pop %v403
        %v468 = vmul.f32 %v403, %v467
        %v469 = vsub.f32 1.0, %v468
        %v470 = vmul.f32 %v467, %v469
        %v471 = vadd.f32 %v467, %v470
        %vm472 = vweird.f32 %v403
        %vm473 = vweird.f32 %v467
        %vm474 = vmor %vm472, %vm473
        %v475 = vsel %vm474, %v467, %v471
        %v476 = vand.u32 2147483647, %v403
        %vm477 = vcmp.eq.f32.partialorder %v476, 8.507059e+37
        %v478 = vand.u32 %v403, 2147483648
        %v479 = vor.u32 1.1754944e-38, %v478
        %v480 = vsel %vm477, %v479, %v475
        %v481 = vmul.f32 1.0, %v480
        %v482 = vrcp.pop %v404
        %v483 = vmul.f32 %v404, %v482
        %v484 = vsub.f32 1.0, %v483
        %v485 = vmul.f32 %v482, %v484
        %v486 = vadd.f32 %v482, %v485
        %vm487 = vweird.f32 %v404
        %vm488 = vweird.f32 %v482
        %vm489 = vmor %vm487, %vm488
        %v490 = vsel %vm489, %v482, %v486
        %v491 = vand.u32 2147483647, %v404
        %vm492 = vcmp.eq.f32.partialorder %v491, 8.507059e+37
        %v493 = vand.u32 %v404, 2147483648
        %v494 = vor.u32 1.1754944e-38, %v493
        %v495 = vsel %vm492, %v494, %v490
        %v496 = vmul.f32 1.0, %v495
        %v497 = vrcp.pop %v405
        %v498 = vmul.f32 %v405, %v497
        %v499 = vsub.f32 1.0, %v498
        %v500 = vmul.f32 %v497, %v499
        %v501 = vadd.f32 %v497, %v500
        %vm502 = vweird.f32 %v405
        %vm503 = vweird.f32 %v497
        %vm504 = vmor %vm502, %vm503
        %v505 = vsel %vm504, %v497, %v501
        %v506 = vand.u32 2147483647, %v405
        %vm507 = vcmp.eq.f32.partialorder %v506, 8.507059e+37
        %v508 = vand.u32 %v405, 2147483648
        %v509 = vor.u32 1.1754944e-38, %v508
        %v510 = vsel %vm507, %v509, %v505
        %v511 = vmul.f32 1.0, %v510
        %v512 = vrcp.pop %v406
        %v513 = vmul.f32 %v406, %v512
        %v514 = vsub.f32 1.0, %v513
        %v515 = vmul.f32 %v512, %v514
        %v516 = vadd.f32 %v512, %v515
        %vm517 = vweird.f32 %v406
        %vm518 = vweird.f32 %v512
        %vm519 = vmor %vm517, %vm518
        %v520 = vsel %vm519, %v512, %v516
        %v521 = vand.u32 2147483647, %v406
        %vm522 = vcmp.eq.f32.partialorder %v521, 8.507059e+37
        %v523 = vand.u32 %v406, 2147483648
        %v524 = vor.u32 1.1754944e-38, %v523
        %v525 = vsel %vm522, %v524, %v520
        %v526 = vmul.f32 1.0, %v525
        %528 = vset.pattern.permute.xlu0 0
        %529 = vperm.xlu0 %528, %v421
        %v530 = vpop.permute.xlu0 %529
        %533 = vset.pattern.permute.xlu0 0
        %534 = vperm.xlu0 %533, %v436
        %v535 = vpop.permute.xlu0 %534
        %538 = vset.pattern.permute.xlu0 0
        %539 = vperm.xlu0 %538, %v451
        %v540 = vpop.permute.xlu0 %539
        %543 = vset.pattern.permute.xlu0 0
        %544 = vperm.xlu0 %543, %v466
        %v545 = vpop.permute.xlu0 %544
        %548 = vset.pattern.permute.xlu0 0
        %549 = vperm.xlu0 %548, %v481
        %v550 = vpop.permute.xlu0 %549
        %553 = vset.pattern.permute.xlu0 0
        %554 = vperm.xlu0 %553, %v496
        %v555 = vpop.permute.xlu0 %554
        %558 = vset.pattern.permute.xlu0 0
        %559 = vperm.xlu0 %558, %v511
        %v560 = vpop.permute.xlu0 %559
        %563 = vset.pattern.permute.xlu0 0
        %564 = vperm.xlu0 %563, %v526
        %v565 = vpop.permute.xlu0 %564
        %v567 = vmul.f32 %v191, %v530
        %v568 = vmul.f32 %v192, %v530
        %v569 = vmul.f32 %v193, %v530
        %v570 = vmul.f32 %v194, %v530
        %v571 = vmul.f32 %v195, %v535
        %v572 = vmul.f32 %v196, %v535
        %v573 = vmul.f32 %v197, %v535
        %v574 = vmul.f32 %v198, %v535
        %v575 = vmul.f32 %v199, %v540
        %v576 = vmul.f32 %v200, %v540
        %v577 = vmul.f32 %v201, %v540
        %v578 = vmul.f32 %v202, %v540
        %v579 = vmul.f32 %v203, %v545
        %v580 = vmul.f32 %v204, %v545
        %v581 = vmul.f32 %v205, %v545
        %v582 = vmul.f32 %v206, %v545
        %v583 = vmul.f32 %v207, %v550
        %v584 = vmul.f32 %v208, %v550
        %v585 = vmul.f32 %v209, %v550
        %v586 = vmul.f32 %v210, %v550
        %v587 = vmul.f32 %v211, %v555
        %v588 = vmul.f32 %v212, %v555
        %v589 = vmul.f32 %v213, %v555
        %v590 = vmul.f32 %v214, %v555
        %v591 = vmul.f32 %v215, %v560
        %v592 = vmul.f32 %v216, %v560
        %v593 = vmul.f32 %v217, %v560
        %v594 = vmul.f32 %v218, %v560
        %v595 = vmul.f32 %v219, %v565
        %v596 = vmul.f32 %v220, %v565
        %v597 = vmul.f32 %v221, %v565
        %v598 = vmul.f32 %v222, %v565
        %599 = vst [vmem:[%s190] sm:$0xff] %v567
        %600 = vst [vmem:[%s190 + $0x8] sm:$0xff] %v568
        %601 = vst [vmem:[%s190 + $0x10] sm:$0xff] %v569
        %602 = vst [vmem:[%s190 + $0x18] sm:$0xff] %v570
        %603 = vst [vmem:[%s190 + $0x20] sm:$0xff] %v571
        %604 = vst [vmem:[%s190 + $0x28] sm:$0xff] %v572
        %605 = vst [vmem:[%s190 + $0x30] sm:$0xff] %v573
        %606 = vst [vmem:[%s190 + $0x38] sm:$0xff] %v574
        %607 = vst [vmem:[%s190 + $0x40] sm:$0xff] %v575
        %608 = vst [vmem:[%s190 + $0x48] sm:$0xff] %v576
        %609 = vst [vmem:[%s190 + $0x50] sm:$0xff] %v577
        %610 = vst [vmem:[%s190 + $0x58] sm:$0xff] %v578
        %611 = vst [vmem:[%s190 + $0x60] sm:$0xff] %v579
        %612 = vst [vmem:[%s190 + $0x68] sm:$0xff] %v580
        %613 = vst [vmem:[%s190 + $0x70] sm:$0xff] %v581
        %614 = vst [vmem:[%s190 + $0x78] sm:$0xff] %v582
        %615 = vst [vmem:[%s190 + $0x80] sm:$0xff] %v583
        %616 = vst [vmem:[%s190 + $0x88] sm:$0xff] %v584
        %617 = vst [vmem:[%s190 + $0x90] sm:$0xff] %v585
        %618 = vst [vmem:[%s190 + $0x98] sm:$0xff] %v586
        %619 = vst [vmem:[%s190 + $0xa0] sm:$0xff] %v587
        %620 = vst [vmem:[%s190 + $0xa8] sm:$0xff] %v588
        %621 = vst [vmem:[%s190 + $0xb0] sm:$0xff] %v589
        %622 = vst [vmem:[%s190 + $0xb8] sm:$0xff] %v590
        %623 = vst [vmem:[%s190 + $0xc0] sm:$0xff] %v591
        %624 = vst [vmem:[%s190 + $0xc8] sm:$0xff] %v592
        %625 = vst [vmem:[%s190 + $0xd0] sm:$0xff] %v593
        %626 = vst [vmem:[%s190 + $0xd8] sm:$0xff] %v594
        %627 = vst [vmem:[%s190 + $0xe0] sm:$0xff] %v595
        %628 = vst [vmem:[%s190 + $0xe8] sm:$0xff] %v596
        %629 = vst [vmem:[%s190 + $0xf0] sm:$0xff] %v597
        %630 = vst [vmem:[%s190 + $0xf8] sm:$0xff] %v598
        %s631 = sand.u32 %s96, 1
        %s632 = scalar_lea.sflag [#allocation4], %s631
        %s633 = sand.u32 %s96, 1
        %s634 = smul.addr %s633, 256
        %s635 = scalar_lea.vmem [#allocation5], %s634
        // Predicated region
        $region37: #{tpu_custom_call.1} parent=31 // pred_check
          %p636 = pneg %p106
        $region38: #{tpu_custom_call.1} parent=31 // pred_check_branch
          %638 = sbr.rel (%p636) target = $region40
        $region39: #{tpu_custom_call.1} parent=31 // pred_region
          %640 = vsyncadd %s632, 0
          %s641 = smul.addr %s20, 32
          %s642 = smul.addr %s641, 8
          %s643 = scalar_lea.hbm %s3, %s642
          %s644 = sshll.u32 %s635, 4
          %s645 = int_to_ptr.vmem [resolvable:$true] %s644
          %s646 = sshll.u32 %s643, 4
          %s647 = int_to_ptr.hbm [resolvable:$true] %s646
          %652 = dma.vmem_to_hbm [thread:$0]  %s645, 4096, %s647, %s632, 512, 512, 32
        $region40: #{tpu_custom_call.1} parent=31 // pred_fallthru
          _
      $region32: #{tpu_custom_call.1} parent=5 // pred_fallthru
        _
      %p653 = scmp.le.s32.totalorder 2, %s15
      // Predicated region
      $region41: #{tpu_custom_call.1} parent=5 // pred_check
        %p654 = pneg %p653
      $region42: #{tpu_custom_call.1} parent=5 // pred_check_branch
        %656 = sbr.rel (%p654) target = $region44
      $region43: #{tpu_custom_call.1} parent=5 // pred_region
        %s657 = ssub.s32 %s15, 2
        // Predicated region
        $region45: #{tpu_custom_call.1} parent=43 // pred_check
          %p658 = pneg %p112
        $region46: #{tpu_custom_call.1} parent=43 // pred_check_branch
          %660 = sbr.rel (%p658) target = $region48
        $region47: #{tpu_custom_call.1} parent=43 // pred_region
          %s661 = sand.u32 %s97, 1
          %s662 = scalar_lea.sflag [#allocation4], %s661
          %s663 = sand.u32 %s97, 1
          %s664 = smul.addr %s663, 256
          %s665 = scalar_lea.vmem [#allocation5], %s664
          %667 = dma.done %s662, 4096
        $region48: #{tpu_custom_call.1} parent=43 // pred_fallthru
          _
      $region44: #{tpu_custom_call.1} parent=5 // pred_fallthru
        _
    $region6: #{tpu_custom_call.1} parent=1 // loop_footer
      %s19 = sadd.s32 1, %s15
    $region7: #{tpu_custom_call.1} parent=1 // loop_footer_branch
      %14 = sbr.rel target = $region3
    $region8: #{tpu_custom_call.1} parent=1 // loop_exit
      _
    %668 = vsyncpa [#allocation3], 1
    %s669 = scalar_lea.sflag [#allocation3], 1
    %670 = vsyncpa %s669, 1
    %671 = vsyncpa [#allocation4], 1
    %s672 = scalar_lea.sflag [#allocation4], 1
    %673 = vsyncpa %s672, 1

</llo_original>
